<compile_context>
chip_gen: v7x
topology: tpu7x:2x2x1
jax: 0.10.0
libtpu: 0.0.40
codegen_flags: <defaults>
</compile_context>

<pallas_src>
import numpy as np

import jax
import jax.numpy as jnp
from jax.experimental import pallas as pl
from jax.experimental.pallas import tpu as pltpu


def _fused_double_conv_kernel(x_ref, w1_ref, b1_ref, w2_ref, b2_ref, o_ref,
                              xp1_ref, xp2_ref):
    """Fused conv3x3+ReLU -> conv3x3+ReLU on lane-dense slabs, whole batch at once.

    x_ref  : (N, H, W*Cin)            f32  lane-dense input
    w1_ref : (3, W*Cin, (W+2)*Cout)   bf16 conv1 banded weights, one slab per kernel row
    b1_ref : (1, (W+2)*Cout)          f32  conv1 bias, lane-dense, zeros at pad columns
    w2_ref : (3, (W+2)*Cout, W*Cout)  bf16 conv2 banded weights
    b2_ref : (1, W*Cout)              f32  conv2 bias, lane-dense
    o_ref  : (N, H, W*Cout)           f32  lane-dense output
    xp1_ref: (N, H+2, W*Cin)          f32  vertically padded conv1 input scratch
    xp2_ref: (N, H+2, (W+2)*Cout)     f32  vertically padded conv2 input scratch
    """
    N, Hp2, K1 = xp1_ref.shape
    H = Hp2 - 2
    K2 = xp2_ref.shape[2]

    # Zero only the top/bottom halo rows (width padding is encoded in the weights and in
    # conv1's zero output-pad columns) -- no full-scratch zero fill.
    xp1_ref[:, 0:1, :] = jnp.zeros((N, 1, K1), xp1_ref.dtype)
    xp1_ref[:, H + 1:H + 2, :] = jnp.zeros((N, 1, K1), xp1_ref.dtype)
    xp2_ref[:, 0:1, :] = jnp.zeros((N, 1, K2), xp2_ref.dtype)
    xp2_ref[:, H + 1:H + 2, :] = jnp.zeros((N, 1, K2), xp2_ref.dtype)

    # Whole-row, lane-dense interior write.
    xp1_ref[:, 1:H + 1, :] = x_ref[...]

    def banded_conv_relu(xp_ref, w_ref, bias):
        # One banded matmul per kernel row: LHS is the batch-fused (N*H, K) row stack of
        # the padded slab shifted by dh (ref-level slices only); the Toeplitz RHS handles
        # the width taps, so the MXU output is already (N*H, Wout*Cout).
        acc = None
        for dh in range(3):
            lhs = jnp.concatenate(
                [xp_ref[n, dh:dh + H, :] for n in range(N)], axis=0)
            lhs = lhs.astype(w_ref.dtype)                    # bf16 MXU operands
            p = jnp.dot(lhs, w_ref[dh], preferred_element_type=jnp.float32)
            acc = p if acc is None else acc + p
        return jnp.maximum(acc + bias, 0.0)                  # f32 bias + ReLU

    # ---- conv1 + bias + ReLU: output lands directly in conv2's padded layout ----
    y1 = banded_conv_relu(xp1_ref, w1_ref, b1_ref[...])      # (N*H, (W+2)*Cout) f32
    for n in range(N):
        xp2_ref[n, 1:H + 1, :] = y1[n * H:(n + 1) * H, :].astype(xp2_ref.dtype)

    # ---- conv2 + bias + ReLU: lane-dense (N, H, W*Cout) output ----
    y2 = banded_conv_relu(xp2_ref, w2_ref, b2_ref[...])      # (N*H, W*Cout) f32
    for n in range(N):
        o_ref[n] = y2[n * H:(n + 1) * H, :].astype(o_ref.dtype)


# ----------------------------------------------------------------------------------
# One-time, host-side parameter packing (fold into checkpoint load in a real model).
# ----------------------------------------------------------------------------------
def _toeplitz_row_weights(w_oihw, W, in_padded, out_padded, dtype=jnp.bfloat16):
    """(Cout, Cin, 3, 3) -> (3, Win*Cin, Wout*Cout) banded-over-width weights.

    Row dh of the 3x3 kernel becomes one banded matrix mapping a lane-dense input row
    (layout (iw, cin)) to a lane-dense output row (layout (ow, cout)).  When
    out_padded, the two pad output columns are all-zero; off-band / out-of-image taps
    are zero (this *is* the 'same' zero padding in the width direction).
    """
    w = np.asarray(w_oihw, np.float32)
    cout, cin = w.shape[0], w.shape[1]
    Win = W + 2 if in_padded else W
    Wout = W + 2 if out_padded else W
    in_off = 1 if in_padded else 0
    out_off = 1 if out_padded else 0
    taps = np.zeros((3, Win * cin, Wout * cout), np.float32)
    for dh in range(3):
        for ow in range(W):
            for dw in range(3):
                iw = ow - 1 + dw
                if 0 <= iw < W:
                    r = (iw + in_off) * cin
                    c = (ow + out_off) * cout
                    taps[dh, r:r + cin, c:c + cout] = w[:, :, dh, dw].T
    return jnp.asarray(taps, dtype)


def _tiled_bias(b, W, out_padded):
    """(Cout,) -> (1, Wout*Cout) lane-dense bias (zeros at pad columns when padded)."""
    b = np.asarray(b, np.float32)
    cout = b.shape[0]
    Wout = W + 2 if out_padded else W
    out_off = 1 if out_padded else 0
    t = np.zeros((1, Wout * cout), np.float32)
    for ow in range(W):
        t[0, (ow + out_off) * cout:(ow + out_off + 1) * cout] = b
    return jnp.asarray(t, jnp.float32)


def normal_conv2d_forward(x_nchw, w1, b1, w2, b2):
    """NormalConv2D forward: relu(conv2(relu(conv1(x)))).  x_nchw: (N, Cin, H, W)."""
    N, Cin, H, W = x_nchw.shape
    Cout = w1.shape[0]

    # Host-side, one-time packing of the parameters into the kernel's layouts.
    w1t = _toeplitz_row_weights(w1, W, in_padded=False, out_padded=True)
    w2t = _toeplitz_row_weights(w2, W, in_padded=True, out_padded=False)
    b1t = _tiled_bias(b1, W, out_padded=True)
    b2t = _tiled_bias(b2, W, out_padded=False)

    # NCHW -> lane-dense (N, H, W*Cin) (transpose only exists for the NCHW interface).
    x_ld = jnp.transpose(x_nchw, (0, 2, 3, 1)).reshape(N, H, W * Cin).astype(jnp.float32)

    vmem = pl.BlockSpec(memory_space=pltpu.MemorySpace.VMEM)
    out = pl.pallas_call(
        _fused_double_conv_kernel,
        out_shape=jax.ShapeDtypeStruct((N, H, W * Cout), jnp.float32),
        in_specs=[vmem] * 5,
        out_specs=vmem,
        scratch_shapes=[
            pltpu.VMEM((N, H + 2, W * Cin), jnp.float32),
            pltpu.VMEM((N, H + 2, (W + 2) * Cout), jnp.float32),
        ],
    )(x_ld, w1t, b1t, w2t, b2t)

    out = out.reshape(N, H, W, Cout)          # undo lane-dense packing
    return jnp.transpose(out, (0, 3, 1, 2))   # back to NCHW (interface requirement)


def _reference_forward(x, w1, b1, w2, b2, operand_dtype=jnp.float32):
    """Plain-JAX NCHW reference.  operand_dtype=bfloat16 reproduces the kernel's MXU
    operand precision (f32 accumulation, f32 bias + ReLU) for a tight comparison."""
    dn = jax.lax.conv_dimension_numbers(x.shape, w1.shape, ("NCHW", "OIHW", "NCHW"))

    def conv_relu(h, w, b):
        y = jax.lax.conv_general_dilated(
            h.astype(operand_dtype), w.astype(operand_dtype), (1, 1), ((1, 1), (1, 1)),
            dimension_numbers=dn, preferred_element_type=jnp.float32,
            precision=jax.lax.Precision.HIGHEST)
        return jnp.maximum(y + b[None, :, None, None], 0.0)

    return conv_relu(conv_relu(x, w1, b1), w2, b2)


if __name__ == "__main__":
    key = jax.random.PRNGKey(0)
    k_x, k_w1, k_b1, k_w2, k_b2 = jax.random.split(key, 5)

    N, Cin, Cout, H, W = 2, 4, 8, 16, 16

    x = jax.random.normal(k_x, (N, Cin, H, W), dtype=jnp.float32)
    # Deterministic synthetic parameters (shapes match nn.Conv2d(in, out, 3, padding=1)).
    w1 = jax.random.normal(k_w1, (Cout, Cin, 3, 3), dtype=jnp.float32) * 0.1
    b1 = jax.random.normal(k_b1, (Cout,), dtype=jnp.float32) * 0.1
    w2 = jax.random.normal(k_w2, (Cout, Cout, 3, 3), dtype=jnp.float32) * 0.1
    b2 = jax.random.normal(k_b2, (Cout,), dtype=jnp.float32) * 0.1

    out = jax.block_until_ready(normal_conv2d_forward(x, w1, b1, w2, b2))
    assert out.shape == (N, Cout, H, W)

    # Tight check vs a precision-matched reference (bf16 MXU operands, f32 accumulate).
    ref_bf16 = jax.block_until_ready(_reference_forward(x, w1, b1, w2, b2, jnp.bfloat16))
    assert jnp.max(jnp.abs(out - ref_bf16)) < 2e-3, jnp.max(jnp.abs(out - ref_bf16))

    # Loose check vs the full-f32 reference (bf16 operand rounding is the only delta).
    ref_f32 = jax.block_until_ready(_reference_forward(x, w1, b1, w2, b2, jnp.float32))
    assert jnp.max(jnp.abs(out - ref_f32)) < 3e-2, jnp.max(jnp.abs(out - ref_f32))

    print("KERNEL_OK")
</pallas_src>

<mosaic_0001>
module attributes {stable_mosaic.version = 11 : i64} {
  func.func @_fused_double_conv_kernel(%arg0: memref<2x16x64xf32, #tpu.memory_space<vmem>>, %arg1: memref<3x64x144xbf16, #tpu.memory_space<vmem>>, %arg2: memref<1x144xf32, #tpu.memory_space<vmem>>, %arg3: memref<3x144x128xbf16, #tpu.memory_space<vmem>>, %arg4: memref<1x128xf32, #tpu.memory_space<vmem>>, %arg5: memref<2x16x128xf32, #tpu.memory_space<vmem>>, %arg6: memref<2x18x64xf32, #tpu.memory_space<vmem>>, %arg7: memref<2x18x144xf32, #tpu.memory_space<vmem>>) attributes {dimension_semantics = [], scalar_prefetch = 0 : i64, scratch_operands = 2 : i64, tpu.core_type = #tpu.core_type<tc>} {
    %cst = arith.constant 0.000000e+00 : f32
    %0 = vector.broadcast %cst : f32 to vector<2x1x64xf32>
    %c0 = arith.constant 0 : index
    %c0_0 = arith.constant 0 : index
    %c0_1 = arith.constant 0 : index
    %1 = vector.load %arg6[%c0, %c0_0, %c0_1] : memref<2x18x64xf32, #tpu.memory_space<vmem>>, vector<2x1x64xf32>
    tpu.vector_store %arg6[%c0, %c0_0, %c0_1], %0 {strides = array<i32>} : memref<2x18x64xf32, #tpu.memory_space<vmem>>, vector<2x1x64xf32>,
    %cst_2 = arith.constant 0.000000e+00 : f32
    %2 = vector.broadcast %cst_2 : f32 to vector<2x1x64xf32>
    %c0_3 = arith.constant 0 : index
    %c17 = arith.constant 17 : index
    %c0_4 = arith.constant 0 : index
    %3 = vector.load %arg6[%c0_3, %c17, %c0_4] : memref<2x18x64xf32, #tpu.memory_space<vmem>>, vector<2x1x64xf32>
    tpu.vector_store %arg6[%c0_3, %c17, %c0_4], %2 {strides = array<i32>} : memref<2x18x64xf32, #tpu.memory_space<vmem>>, vector<2x1x64xf32>,
    %cst_5 = arith.constant 0.000000e+00 : f32
    %4 = vector.broadcast %cst_5 : f32 to vector<2x1x144xf32>
    %c0_6 = arith.constant 0 : index
    %c0_7 = arith.constant 0 : index
    %c0_8 = arith.constant 0 : index
    %5 = vector.load %arg7[%c0_6, %c0_7, %c0_8] : memref<2x18x144xf32, #tpu.memory_space<vmem>>, vector<2x1x144xf32>
    tpu.vector_store %arg7[%c0_6, %c0_7, %c0_8], %4 {strides = array<i32>} : memref<2x18x144xf32, #tpu.memory_space<vmem>>, vector<2x1x144xf32>,
    %cst_9 = arith.constant 0.000000e+00 : f32
    %6 = vector.broadcast %cst_9 : f32 to vector<2x1x144xf32>
    %c0_10 = arith.constant 0 : index
    %c17_11 = arith.constant 17 : index
    %c0_12 = arith.constant 0 : index
    %7 = vector.load %arg7[%c0_10, %c17_11, %c0_12] : memref<2x18x144xf32, #tpu.memory_space<vmem>>, vector<2x1x144xf32>
    tpu.vector_store %arg7[%c0_10, %c17_11, %c0_12], %6 {strides = array<i32>} : memref<2x18x144xf32, #tpu.memory_space<vmem>>, vector<2x1x144xf32>,
    %c0_13 = arith.constant 0 : index
    %c0_14 = arith.constant 0 : index
    %c0_15 = arith.constant 0 : index
    %8 = vector.load %arg0[%c0_13, %c0_14, %c0_15] : memref<2x16x64xf32, #tpu.memory_space<vmem>>, vector<2x16x64xf32>
    %c0_16 = arith.constant 0 : index
    %c1 = arith.constant 1 : index
    %c0_17 = arith.constant 0 : index
    %9 = vector.load %arg6[%c0_16, %c1, %c0_17] : memref<2x18x64xf32, #tpu.memory_space<vmem>>, vector<2x16x64xf32>
    tpu.vector_store %arg6[%c0_16, %c1, %c0_17], %8 {strides = array<i32>} : memref<2x18x64xf32, #tpu.memory_space<vmem>>, vector<2x16x64xf32>,
    %c0_18 = arith.constant 0 : index
    %c0_19 = arith.constant 0 : index
    %10 = vector.load %arg2[%c0_18, %c0_19] : memref<1x144xf32, #tpu.memory_space<vmem>>, vector<1x144xf32>
    %c0_20 = arith.constant 0 : index
    %c0_21 = arith.constant 0 : index
    %c0_22 = arith.constant 0 : index
    %11 = vector.load %arg6[%c0_20, %c0_21, %c0_22] : memref<2x18x64xf32, #tpu.memory_space<vmem>>, vector<1x16x64xf32>
    %12 = vector.shape_cast %11 : vector<1x16x64xf32> to vector<16x64xf32>
    %c1_23 = arith.constant 1 : index
    %c0_24 = arith.constant 0 : index
    %c0_25 = arith.constant 0 : index
    %13 = vector.load %arg6[%c1_23, %c0_24, %c0_25] : memref<2x18x64xf32, #tpu.memory_space<vmem>>, vector<1x16x64xf32>
    %14 = vector.shape_cast %13 : vector<1x16x64xf32> to vector<16x64xf32>
    %15 = tpu.concatenate %12, %14 in 0 : vector<16x64xf32>, vector<16x64xf32> -> vector<32x64xf32>
    %16 = arith.truncf %15 : vector<32x64xf32> to vector<32x64xbf16>
    %c0_26 = arith.constant 0 : index
    %c0_27 = arith.constant 0 : index
    %c0_28 = arith.constant 0 : index
    %17 = vector.load %arg1[%c0_26, %c0_27, %c0_28] : memref<3x64x144xbf16, #tpu.memory_space<vmem>>, vector<1x64x144xbf16>
    %18 = vector.shape_cast %17 : vector<1x64x144xbf16> to vector<64x144xbf16>
    %cst_29 = arith.constant dense<0.000000e+00> : vector<32x144xf32>
    %19 = tpu.matmul %16, %18, %cst_29 {dimension_numbers = #tpu.dot_dimension_numbers<[1], [0], [0], [1], [0, 0, 1, 1], [], []>} : vector<32x64xbf16>, vector<64x144xbf16>, vector<32x144xf32> -> vector<32x144xf32>
    %c0_30 = arith.constant 0 : index
    %c1_31 = arith.constant 1 : index
    %c0_32 = arith.constant 0 : index
    %20 = vector.load %arg6[%c0_30, %c1_31, %c0_32] : memref<2x18x64xf32, #tpu.memory_space<vmem>>, vector<1x16x64xf32>
    %21 = vector.shape_cast %20 : vector<1x16x64xf32> to vector<16x64xf32>
    %c1_33 = arith.constant 1 : index
    %c1_34 = arith.constant 1 : index
    %c0_35 = arith.constant 0 : index
    %22 = vector.load %arg6[%c1_33, %c1_34, %c0_35] : memref<2x18x64xf32, #tpu.memory_space<vmem>>, vector<1x16x64xf32>
    %23 = vector.shape_cast %22 : vector<1x16x64xf32> to vector<16x64xf32>
    %24 = tpu.concatenate %21, %23 in 0 : vector<16x64xf32>, vector<16x64xf32> -> vector<32x64xf32>
    %25 = arith.truncf %24 : vector<32x64xf32> to vector<32x64xbf16>
    %c1_36 = arith.constant 1 : index
    %c0_37 = arith.constant 0 : index
    %c0_38 = arith.constant 0 : index
    %26 = vector.load %arg1[%c1_36, %c0_37, %c0_38] : memref<3x64x144xbf16, #tpu.memory_space<vmem>>, vector<1x64x144xbf16>
    %27 = vector.shape_cast %26 : vector<1x64x144xbf16> to vector<64x144xbf16>
    %cst_39 = arith.constant dense<0.000000e+00> : vector<32x144xf32>
    %28 = tpu.matmul %25, %27, %cst_39 {dimension_numbers = #tpu.dot_dimension_numbers<[1], [0], [0], [1], [0, 0, 1, 1], [], []>} : vector<32x64xbf16>, vector<64x144xbf16>, vector<32x144xf32> -> vector<32x144xf32>
    %29 = arith.addf %19, %28 : vector<32x144xf32>
    %c0_40 = arith.constant 0 : index
    %c2 = arith.constant 2 : index
    %c0_41 = arith.constant 0 : index
    %30 = vector.load %arg6[%c0_40, %c2, %c0_41] : memref<2x18x64xf32, #tpu.memory_space<vmem>>, vector<1x16x64xf32>
    %31 = vector.shape_cast %30 : vector<1x16x64xf32> to vector<16x64xf32>
    %c1_42 = arith.constant 1 : index
    %c2_43 = arith.constant 2 : index
    %c0_44 = arith.constant 0 : index
    %32 = vector.load %arg6[%c1_42, %c2_43, %c0_44] : memref<2x18x64xf32, #tpu.memory_space<vmem>>, vector<1x16x64xf32>
    %33 = vector.shape_cast %32 : vector<1x16x64xf32> to vector<16x64xf32>
    %34 = tpu.concatenate %31, %33 in 0 : vector<16x64xf32>, vector<16x64xf32> -> vector<32x64xf32>
    %35 = arith.truncf %34 : vector<32x64xf32> to vector<32x64xbf16>
    %c2_45 = arith.constant 2 : index
    %c0_46 = arith.constant 0 : index
    %c0_47 = arith.constant 0 : index
    %36 = vector.load %arg1[%c2_45, %c0_46, %c0_47] : memref<3x64x144xbf16, #tpu.memory_space<vmem>>, vector<1x64x144xbf16>
    %37 = vector.shape_cast %36 : vector<1x64x144xbf16> to vector<64x144xbf16>
    %cst_48 = arith.constant dense<0.000000e+00> : vector<32x144xf32>
    %38 = tpu.matmul %35, %37, %cst_48 {dimension_numbers = #tpu.dot_dimension_numbers<[1], [0], [0], [1], [0, 0, 1, 1], [], []>} : vector<32x64xbf16>, vector<64x144xbf16>, vector<32x144xf32> -> vector<32x144xf32>
    %39 = arith.addf %29, %38 : vector<32x144xf32>
    %40 = vector.broadcast %10 : vector<1x144xf32> to vector<32x144xf32>
    %41 = arith.addf %39, %40 : vector<32x144xf32>
    %cst_49 = arith.constant 0.000000e+00 : f32
    %42 = vector.broadcast %cst_49 : f32 to vector<32x144xf32>
    %43 = arith.maximumf %41, %42 : vector<32x144xf32>
    %44 = vector.extract_strided_slice %43 {offsets = [0, 0], sizes = [16, 144], strides = [1, 1]} : vector<32x144xf32> to vector<16x144xf32>
    %c0_50 = arith.constant 0 : index
    %c1_51 = arith.constant 1 : index
    %c0_52 = arith.constant 0 : index
    %45 = vector.load %arg7[%c0_50, %c1_51, %c0_52] : memref<2x18x144xf32, #tpu.memory_space<vmem>>, vector<1x16x144xf32>
    %46 = vector.shape_cast %45 : vector<1x16x144xf32> to vector<16x144xf32>
    %47 = vector.shape_cast %44 : vector<16x144xf32> to vector<1x16x144xf32>
    tpu.vector_store %arg7[%c0_50, %c1_51, %c0_52], %47 {strides = array<i32>} : memref<2x18x144xf32, #tpu.memory_space<vmem>>, vector<1x16x144xf32>,
    %48 = vector.extract_strided_slice %43 {offsets = [16, 0], sizes = [16, 144], strides = [1, 1]} : vector<32x144xf32> to vector<16x144xf32>
    %c1_53 = arith.constant 1 : index
    %c1_54 = arith.constant 1 : index
    %c0_55 = arith.constant 0 : index
    %49 = vector.load %arg7[%c1_53, %c1_54, %c0_55] : memref<2x18x144xf32, #tpu.memory_space<vmem>>, vector<1x16x144xf32>
    %50 = vector.shape_cast %49 : vector<1x16x144xf32> to vector<16x144xf32>
    %51 = vector.shape_cast %48 : vector<16x144xf32> to vector<1x16x144xf32>
    tpu.vector_store %arg7[%c1_53, %c1_54, %c0_55], %51 {strides = array<i32>} : memref<2x18x144xf32, #tpu.memory_space<vmem>>, vector<1x16x144xf32>,
    %c0_56 = arith.constant 0 : index
    %c0_57 = arith.constant 0 : index
    %52 = vector.load %arg4[%c0_56, %c0_57] : memref<1x128xf32, #tpu.memory_space<vmem>>, vector<1x128xf32>
    %c0_58 = arith.constant 0 : index
    %c0_59 = arith.constant 0 : index
    %c0_60 = arith.constant 0 : index
    %53 = vector.load %arg7[%c0_58, %c0_59, %c0_60] : memref<2x18x144xf32, #tpu.memory_space<vmem>>, vector<1x16x144xf32>
    %54 = vector.shape_cast %53 : vector<1x16x144xf32> to vector<16x144xf32>
    %c1_61 = arith.constant 1 : index
    %c0_62 = arith.constant 0 : index
    %c0_63 = arith.constant 0 : index
    %55 = vector.load %arg7[%c1_61, %c0_62, %c0_63] : memref<2x18x144xf32, #tpu.memory_space<vmem>>, vector<1x16x144xf32>
    %56 = vector.shape_cast %55 : vector<1x16x144xf32> to vector<16x144xf32>
    %57 = tpu.concatenate %54, %56 in 0 : vector<16x144xf32>, vector<16x144xf32> -> vector<32x144xf32>
    %58 = arith.truncf %57 : vector<32x144xf32> to vector<32x144xbf16>
    %c0_64 = arith.constant 0 : index
    %c0_65 = arith.constant 0 : index
    %c0_66 = arith.constant 0 : index
    %59 = vector.load %arg3[%c0_64, %c0_65, %c0_66] : memref<3x144x128xbf16, #tpu.memory_space<vmem>>, vector<1x144x128xbf16>
    %60 = vector.shape_cast %59 : vector<1x144x128xbf16> to vector<144x128xbf16>
    %cst_67 = arith.constant dense<0.000000e+00> : vector<32x128xf32>
    %61 = tpu.matmul %58, %60, %cst_67 {dimension_numbers = #tpu.dot_dimension_numbers<[1], [0], [0], [1], [0, 0, 1, 1], [], []>} : vector<32x144xbf16>, vector<144x128xbf16>, vector<32x128xf32> -> vector<32x128xf32>
    %c0_68 = arith.constant 0 : index
    %c1_69 = arith.constant 1 : index
    %c0_70 = arith.constant 0 : index
    %62 = vector.load %arg7[%c0_68, %c1_69, %c0_70] : memref<2x18x144xf32, #tpu.memory_space<vmem>>, vector<1x16x144xf32>
    %63 = vector.shape_cast %62 : vector<1x16x144xf32> to vector<16x144xf32>
    %c1_71 = arith.constant 1 : index
    %c1_72 = arith.constant 1 : index
    %c0_73 = arith.constant 0 : index
    %64 = vector.load %arg7[%c1_71, %c1_72, %c0_73] : memref<2x18x144xf32, #tpu.memory_space<vmem>>, vector<1x16x144xf32>
    %65 = vector.shape_cast %64 : vector<1x16x144xf32> to vector<16x144xf32>
    %66 = tpu.concatenate %63, %65 in 0 : vector<16x144xf32>, vector<16x144xf32> -> vector<32x144xf32>
    %67 = arith.truncf %66 : vector<32x144xf32> to vector<32x144xbf16>
    %c1_74 = arith.constant 1 : index
    %c0_75 = arith.constant 0 : index
    %c0_76 = arith.constant 0 : index
    %68 = vector.load %arg3[%c1_74, %c0_75, %c0_76] : memref<3x144x128xbf16, #tpu.memory_space<vmem>>, vector<1x144x128xbf16>
    %69 = vector.shape_cast %68 : vector<1x144x128xbf16> to vector<144x128xbf16>
    %cst_77 = arith.constant dense<0.000000e+00> : vector<32x128xf32>
    %70 = tpu.matmul %67, %69, %cst_77 {dimension_numbers = #tpu.dot_dimension_numbers<[1], [0], [0], [1], [0, 0, 1, 1], [], []>} : vector<32x144xbf16>, vector<144x128xbf16>, vector<32x128xf32> -> vector<32x128xf32>
    %71 = arith.addf %61, %70 : vector<32x128xf32>
    %c0_78 = arith.constant 0 : index
    %c2_79 = arith.constant 2 : index
    %c0_80 = arith.constant 0 : index
    %72 = vector.load %arg7[%c0_78, %c2_79, %c0_80] : memref<2x18x144xf32, #tpu.memory_space<vmem>>, vector<1x16x144xf32>
    %73 = vector.shape_cast %72 : vector<1x16x144xf32> to vector<16x144xf32>
    %c1_81 = arith.constant 1 : index
    %c2_82 = arith.constant 2 : index
    %c0_83 = arith.constant 0 : index
    %74 = vector.load %arg7[%c1_81, %c2_82, %c0_83] : memref<2x18x144xf32, #tpu.memory_space<vmem>>, vector<1x16x144xf32>
    %75 = vector.shape_cast %74 : vector<1x16x144xf32> to vector<16x144xf32>
    %76 = tpu.concatenate %73, %75 in 0 : vector<16x144xf32>, vector<16x144xf32> -> vector<32x144xf32>
    %77 = arith.truncf %76 : vector<32x144xf32> to vector<32x144xbf16>
    %c2_84 = arith.constant 2 : index
    %c0_85 = arith.constant 0 : index
    %c0_86 = arith.constant 0 : index
    %78 = vector.load %arg3[%c2_84, %c0_85, %c0_86] : memref<3x144x128xbf16, #tpu.memory_space<vmem>>, vector<1x144x128xbf16>
    %79 = vector.shape_cast %78 : vector<1x144x128xbf16> to vector<144x128xbf16>
    %cst_87 = arith.constant dense<0.000000e+00> : vector<32x128xf32>
    %80 = tpu.matmul %77, %79, %cst_87 {dimension_numbers = #tpu.dot_dimension_numbers<[1], [0], [0], [1], [0, 0, 1, 1], [], []>} : vector<32x144xbf16>, vector<144x128xbf16>, vector<32x128xf32> -> vector<32x128xf32>
    %81 = arith.addf %71, %80 : vector<32x128xf32>
    %82 = vector.broadcast %52 : vector<1x128xf32> to vector<32x128xf32>
    %83 = arith.addf %81, %82 : vector<32x128xf32>
    %cst_88 = arith.constant 0.000000e+00 : f32
    %84 = vector.broadcast %cst_88 : f32 to vector<32x128xf32>
    %85 = arith.maximumf %83, %84 : vector<32x128xf32>
    %86 = vector.extract_strided_slice %85 {offsets = [0, 0], sizes = [16, 128], strides = [1, 1]} : vector<32x128xf32> to vector<16x128xf32>
    %c0_89 = arith.constant 0 : index
    %c0_90 = arith.constant 0 : index
    %c0_91 = arith.constant 0 : index
    %87 = vector.load %arg5[%c0_89, %c0_90, %c0_91] : memref<2x16x128xf32, #tpu.memory_space<vmem>>, vector<1x16x128xf32>
    %88 = vector.shape_cast %87 : vector<1x16x128xf32> to vector<16x128xf32>
    %89 = vector.shape_cast %86 : vector<16x128xf32> to vector<1x16x128xf32>
    tpu.vector_store %arg5[%c0_89, %c0_90, %c0_91], %89 {strides = array<i32>} : memref<2x16x128xf32, #tpu.memory_space<vmem>>, vector<1x16x128xf32>,
    %90 = vector.extract_strided_slice %85 {offsets = [16, 0], sizes = [16, 128], strides = [1, 1]} : vector<32x128xf32> to vector<16x128xf32>
    %c1_92 = arith.constant 1 : index
    %c0_93 = arith.constant 0 : index
    %c0_94 = arith.constant 0 : index
    %91 = vector.load %arg5[%c1_92, %c0_93, %c0_94] : memref<2x16x128xf32, #tpu.memory_space<vmem>>, vector<1x16x128xf32>
    %92 = vector.shape_cast %91 : vector<1x16x128xf32> to vector<16x128xf32>
    %93 = vector.shape_cast %90 : vector<16x128xf32> to vector<1x16x128xf32>
    tpu.vector_store %arg5[%c1_92, %c0_93, %c0_94], %93 {strides = array<i32>} : memref<2x16x128xf32, #tpu.memory_space<vmem>>, vector<1x16x128xf32>,
    return
  }
}

</mosaic_0001>

<llo_original>
// kernel: tpu_custom_call.1
$region0: #{tpu_custom_call.1}
  #allocation0 [shape = 'u32[]', space=smem, size = 0x4, offset = 0x4, fixed_abs, tag = 'smem constant byte address 0x4 - core index']
  #allocation1 [shape = 'u32[144,128]{1,0:T(1,128)}', space=vmem, size = 0x12000, scoped, tag = 'internal scratch']
  #allocation2 [shape = 'f32[2,18,64]{2,1,0:T(8,128)}', space=vmem, size = 0x6000, scoped, tag = 'scratch operand']
  #allocation3 [shape = 'f32[2,18,144]{2,1,0:T(8,128)}', space=vmem, size = 0xc000, scoped, tag = 'scratch operand']
  %s0 = inlined_call_operand.hbm [shape: f32[2,16,64], index: 0, kind: input, shape index: {}]
  %s1 = inlined_call_operand.hbm [shape: bf16[3,64,144], index: 1, kind: input, shape index: {}]
  %s2 = inlined_call_operand.vmem [shape: f32[1,144], index: 2, kind: input, shape index: {}]
  %s3 = inlined_call_operand.hbm [shape: bf16[3,144,128], index: 3, kind: input, shape index: {}]
  %s4 = inlined_call_operand.vmem [shape: f32[1,128], index: 4, kind: input, shape index: {}]
  %s5 = inlined_call_operand.hbm [shape: f32[2,16,128], index: 5, kind: output, shape index: {}]
  %s6 = sld [smem:[#allocation0]]
  $region42: #{tpu_custom_call.1} parent=0
    _
  %s8 = ssub.s32 1, %s6
  %s9 = scalar_select 0, %s8, %s6
  $region1: #{tpu_custom_call.1} parent=0
    #allocation4 [shape = 'u8[16384]{0}', space=vmem, size = 0x4000, scoped, tag = 'input window, operand 0, single buffered']
    #allocation5 [shape = 's32[1]{0}', space=sflag, size = 0x4, scoped, tag = 'scoped memory for tpu_custom_call.1']
    #allocation6 [shape = 's32[1]{0}', space=sflag, size = 0x4, scoped, tag = 'scoped memory for tpu_custom_call.1']
    #allocation7 [shape = 'u8[98304]{0}', space=vmem, size = 0x18000, scoped, tag = 'input window, operand 1, single buffered']
    #allocation8 [shape = 's32[1]{0}', space=sflag, size = 0x4, scoped, tag = 'scoped memory for tpu_custom_call.1']
    #allocation9 [shape = 'u8[110592]{0}', space=vmem, size = 0x1b000, scoped, tag = 'input window, operand 3, single buffered']
    #allocation10 [shape = 'u8[16384]{0}', space=vmem, size = 0x4000, scoped, tag = 'output window, operand 0, single buffered']
    %10 = vsyncpa [#allocation5], 0
    %11 = vsyncpa [#allocation8], 0
    %12 = vsyncpa [#allocation6], 0
    // Predicated region
    $region2: #{tpu_custom_call.1} parent=1 // pred_check
      _
    $region3: #{tpu_custom_call.1} parent=1 // pred_check_branch
      %14 = sbr.rel (0) target = $region5
    $region4: #{tpu_custom_call.1} parent=1 // pred_region
      %s16 = ssub.s32 512, 512
      %17 = vsyncadd [#allocation5], %s16
      %s18 = sshll.u32 [#allocation4], 4
      %s19 = int_to_ptr.vmem [resolvable:$true] %s18
      %24 = dma.hbm_to_vmem [thread:$0]  %s0, 512, %s19, [#allocation5], 128, 128, 8
    $region5: #{tpu_custom_call.1} parent=1 // pred_fallthru
      _
    // Predicated region
    $region6: #{tpu_custom_call.1} parent=1 // pred_check
      _
    $region7: #{tpu_custom_call.1} parent=1 // pred_check_branch
      %26 = sbr.rel (0) target = $region9
    $region8: #{tpu_custom_call.1} parent=1 // pred_region
      %s28 = ssub.s32 3072, 3072
      %29 = vsyncadd [#allocation8], %s28
      %s30 = sshll.u32 [#allocation7], 4
      %s31 = int_to_ptr.vmem [resolvable:$true] %s30
      %36 = dma.hbm_to_vmem [thread:$0]  %s1, 3072, %s31, [#allocation8], 128, 128, 8
    $region9: #{tpu_custom_call.1} parent=1 // pred_fallthru
      _
    // Predicated region
    $region10: #{tpu_custom_call.1} parent=1 // pred_check
      _
    $region11: #{tpu_custom_call.1} parent=1 // pred_check_branch
      %38 = sbr.rel (0) target = $region13
    $region12: #{tpu_custom_call.1} parent=1 // pred_region
      _
    $region13: #{tpu_custom_call.1} parent=1 // pred_fallthru
      _
    // Predicated region
    $region14: #{tpu_custom_call.1} parent=1 // pred_check
      _
    $region15: #{tpu_custom_call.1} parent=1 // pred_check_branch
      %40 = sbr.rel (0) target = $region17
    $region16: #{tpu_custom_call.1} parent=1 // pred_region
      %s42 = ssub.s32 3456, 3456
      %43 = vsyncadd [#allocation8], %s42
      %s44 = sshll.u32 [#allocation9], 4
      %s45 = int_to_ptr.vmem [resolvable:$true] %s44
      %50 = dma.hbm_to_vmem [thread:$0]  %s3, 3456, %s45, [#allocation8], 64, 64, 4
    $region17: #{tpu_custom_call.1} parent=1 // pred_fallthru
      _
    // Predicated region
    $region18: #{tpu_custom_call.1} parent=1 // pred_check
      _
    $region19: #{tpu_custom_call.1} parent=1 // pred_check_branch
      %52 = sbr.rel (0) target = $region21
    $region20: #{tpu_custom_call.1} parent=1 // pred_region
      _
    $region21: #{tpu_custom_call.1} parent=1 // pred_fallthru
      _
    // Predicated region
    $region22: #{tpu_custom_call.1} parent=1 // pred_check
      _
    $region23: #{tpu_custom_call.1} parent=1 // pred_check_branch
      %54 = sbr.rel (0) target = $region25
    $region24: #{tpu_custom_call.1} parent=1 // pred_region
      %55 = dma.done [#allocation5], 512
    $region25: #{tpu_custom_call.1} parent=1 // pred_fallthru
      _
    // Predicated region
    $region26: #{tpu_custom_call.1} parent=1 // pred_check
      _
    $region27: #{tpu_custom_call.1} parent=1 // pred_check_branch
      %57 = sbr.rel (0) target = $region29
    $region28: #{tpu_custom_call.1} parent=1 // pred_region
      %58 = dma.done [#allocation8], 3072
    $region29: #{tpu_custom_call.1} parent=1 // pred_fallthru
      _
    // Predicated region
    $region30: #{tpu_custom_call.1} parent=1 // pred_check
      _
    $region31: #{tpu_custom_call.1} parent=1 // pred_check_branch
      %60 = sbr.rel (0) target = $region33
    $region32: #{tpu_custom_call.1} parent=1 // pred_region
      %61 = dma.done [#allocation8], 3456
    $region33: #{tpu_custom_call.1} parent=1 // pred_fallthru
      _
    %vm63 = vcmask 516096
    %64 = vst.msk [vmem:[#allocation2] sm:$0x1] %vm63, 0.0
    %65 = vst.msk [vmem:[#allocation2 + $0x18] sm:$0x1] %vm63, 0.0
    %66 = vst.msk [vmem:[#allocation2 + $0x11] sm:$0x1] %vm63, 0.0
    %67 = vst.msk [vmem:[#allocation2 + $0x29] sm:$0x1] %vm63, 0.0
    %v68 = vlaneseq
    %vm69 = vcmp.ge.s32.totalorder %v68, 0
    %vm70 = vcmp.lt.s32.totalorder %v68, 144
    %vm71 = vmand %vm69, %vm70
    %72 = vst.msk [vmem:[#allocation3] ss:$8 sm:$0x3] %vm71, 0.0
    %73 = vst.msk [vmem:[#allocation3] ss:$8 sm:$0x0] %vm71, 0.0
    %s74 = scalar_lea.vmem [#allocation3], 48
    %75 = vst.msk [vmem:[%s74] ss:$8 sm:$0x3] %vm71, 0.0
    %76 = vst.msk [vmem:[%s74] ss:$8 sm:$0x0] %vm71, 0.0
    %s77 = scalar_lea.vmem [#allocation3], 33
    %78 = vst.msk [vmem:[%s77] ss:$8 sm:$0x3] %vm71, 0.0
    %79 = vst.msk [vmem:[%s77] ss:$8 sm:$0x0] %vm71, 0.0
    %s80 = scalar_lea.vmem [#allocation3], 81
    %81 = vst.msk [vmem:[%s80] ss:$8 sm:$0x3] %vm71, 0.0
    %82 = vst.msk [vmem:[%s80] ss:$8 sm:$0x0] %vm71, 0.0
    %v83 = vld [vmem:[#allocation4] sm:$0xff]
    %v84 = vld [vmem:[#allocation4 + $0x8] sm:$0xff]
    %v85 = vld [vmem:[#allocation4 + $0x10] sm:$0xff]
    %v86 = vld [vmem:[#allocation4 + $0x18] sm:$0xff]
    %vm87 = vcmask 523264
    %88 = vst.msk [vmem:[#allocation2 + $0x1] sm:$0xff] %vm87, %v83
    %89 = vst.msk [vmem:[#allocation2 + $0x9] sm:$0xff] %vm87, %v84
    %90 = vst.msk [vmem:[#allocation2 + $0x19] sm:$0xff] %vm87, %v85
    %91 = vst.msk [vmem:[#allocation2 + $0x21] sm:$0xff] %vm87, %v86
    %v92 = vld [vmem:[%s2] sm:$0x3]
    %v93 = vld [vmem:[#allocation2] sm:$0xff]
    %v94 = vld [vmem:[#allocation2 + $0x8] sm:$0xff]
    %s95 = scalar_lea.vmem [#allocation2], 24
    %v96 = vld [vmem:[%s95] sm:$0xff]
    %v97 = vld [vmem:[%s95 + $0x8] sm:$0xff]
    %v98 = vpack.c.bf16 %v94, %v93
    %v99 = vpack.c.bf16 %v97, %v96
    %v100 = vld [vmem:[#allocation7] sm:$0xff]
    %v101 = vld [vmem:[#allocation7 + $0x8] sm:$0xff]
    %v102 = vld [vmem:[#allocation7 + $0x10] sm:$0xff]
    %v103 = vld [vmem:[#allocation7 + $0x18] sm:$0xff]
    %v104 = vld [vmem:[#allocation7 + $0x20] sm:$0xff]
    %v105 = vld [vmem:[#allocation7 + $0x28] sm:$0xff]
    %v106 = vld [vmem:[#allocation7 + $0x30] sm:$0xff]
    %v107 = vld [vmem:[#allocation7 + $0x38] sm:$0xff]
    %v108 = vld [vmem:[#allocation2 + $0x1] sm:$0xff]
    %v109 = vld [vmem:[#allocation2 + $0x9] sm:$0xff]
    %v110 = vld [vmem:[%s95 + $0x1] sm:$0xff]
    %v111 = vld [vmem:[%s95 + $0x9] sm:$0xff]
    %v112 = vpack.c.bf16 %v109, %v108
    %v113 = vpack.c.bf16 %v111, %v110
    %s114 = scalar_lea.vmem [#allocation7], 64
    %v115 = vld [vmem:[%s114] sm:$0xff]
    %v116 = vld [vmem:[%s114 + $0x8] sm:$0xff]
    %v117 = vld [vmem:[%s114 + $0x10] sm:$0xff]
    %v118 = vld [vmem:[%s114 + $0x18] sm:$0xff]
    %v119 = vld [vmem:[%s114 + $0x20] sm:$0xff]
    %v120 = vld [vmem:[%s114 + $0x28] sm:$0xff]
    %v121 = vld [vmem:[%s114 + $0x30] sm:$0xff]
    %v122 = vld [vmem:[%s114 + $0x38] sm:$0xff]
    %v131 = vunpack.c.l.b16 %v115
    %v132 = vunpack.c.h.b16 %v115
    %v133 = vunpack.c.l.b16 %v116
    %v134 = vunpack.c.h.b16 %v116
    %v135 = vunpack.c.l.b16 %v117
    %v136 = vunpack.c.h.b16 %v117
    %v137 = vunpack.c.l.b16 %v118
    %v138 = vunpack.c.h.b16 %v118
    %v139 = vunpack.c.l.b16 %v119
    %v140 = vunpack.c.h.b16 %v119
    %v141 = vunpack.c.l.b16 %v120
    %v142 = vunpack.c.h.b16 %v120
    %v143 = vunpack.c.l.b16 %v121
    %v144 = vunpack.c.h.b16 %v121
    %v145 = vunpack.c.l.b16 %v122
    %v146 = vunpack.c.h.b16 %v122
    %v147 = vpack.c.b16 %v133, %v131
    %v148 = vpack.c.b16 %v134, %v132
    %v149 = vpack.c.b16 %v137, %v135
    %v150 = vpack.c.b16 %v138, %v136
    %v151 = vpack.c.b16 %v141, %v139
    %v152 = vpack.c.b16 %v142, %v140
    %v153 = vpack.c.b16 %v145, %v143
    %v154 = vpack.c.b16 %v146, %v144
    %v164 = vsel %vm87, %v112, 0
    %v167 = vsel %vm87, %v113, 0
    %169 = vmatprep.subr.bf16.mxu0 %v148
    %170 = vmatpush1.bf16.msra.mxu0 %v147
    %171 = vmatprep.subr.bf16.mxu0 %v150
    %172 = vmatpush1.bf16.msra.mxu0 %v149
    %173 = vmatprep.subr.bf16.mxu0 %v152
    %174 = vmatpush1.bf16.msra.mxu0 %v151
    %175 = vmatprep.subr.bf16.mxu0 %v154
    %176 = vmatpush1.bf16.msra.mxu0 %v153
    %177 = vmatprep.subr.bf16.mxu0 0
    %178 = vmatpush1.bf16.msra.mxu0 0
    %179 = vmatprep.subr.bf16.mxu0 0
    %180 = vmatpush1.bf16.msra.mxu0 0
    %181 = vmatprep.subr.bf16.mxu0 0
    %182 = vmatpush1.bf16.msra.mxu0 0
    %183 = vmatprep.subr.bf16.mxu0 0
    %184 = vmatpush1.bf16.msra.mxu0 0
    %185 = vmatprep.subr.bf16.mxu0 0
    %186 = vmatpush1.bf16.msra.mxu0 0
    %187 = vmatprep.subr.bf16.mxu0 0
    %188 = vmatpush1.bf16.msra.mxu0 0
    %189 = vmatprep.subr.bf16.mxu0 0
    %190 = vmatpush1.bf16.msra.mxu0 0
    %191 = vmatprep.subr.bf16.mxu0 0
    %192 = vmatpush1.bf16.msra.mxu0 0
    %193 = vmatprep.subr.bf16.mxu0 0
    %194 = vmatpush1.bf16.msra.mxu0 0
    %195 = vmatprep.subr.bf16.mxu0 0
    %196 = vmatpush1.bf16.msra.mxu0 0
    %197 = vmatprep.subr.bf16.mxu0 0
    %198 = vmatpush1.bf16.msra.mxu0 0
    %199 = vmatprep.subr.bf16.mxu0 0
    %200 = vmatpush1.bf16.msra.mxu0 0
    %201 = vmatprep.mubr.bf16.mxu0 0
    %202 = vmatmul.mubr.bf16.gmra.mrb[0].mxu0 %v164
    %v203 = vpop.f32.mrb[0].mxu0
    %v204 = vadd.f32 0.0, %v203
    %v205 = vpop.f32.mrb[0].mxu0
    %v206 = vadd.f32 0.0, %v205
    %v207 = vpop.f32.mrb[0].mxu0
    %v208 = vadd.f32 0.0, %v207
    %v209 = vpop.f32.mrb[0].mxu0
    %v210 = vadd.f32 0.0, %v209
    %211 = vmatprep.mubr.bf16.mxu0 0
    %212 = vmatmul.mubr.bf16.gmra.mrb[0].mxu0 %v167
    %v213 = vpop.f32.mrb[0].mxu0
    %v214 = vadd.f32 0.0, %v213
    %v215 = vpop.f32.mrb[0].mxu0
    %v216 = vadd.f32 0.0, %v215
    %v217 = vpop.f32.mrb[0].mxu0
    %v218 = vadd.f32 0.0, %v217
    %v219 = vpop.f32.mrb[0].mxu0
    %v220 = vadd.f32 0.0, %v219
    %221 = vdwg.mxu0
    %v230 = vunpack.c.l.b16 %v100
    %v231 = vunpack.c.h.b16 %v100
    %v232 = vunpack.c.l.b16 %v101
    %v233 = vunpack.c.h.b16 %v101
    %v234 = vunpack.c.l.b16 %v102
    %v235 = vunpack.c.h.b16 %v102
    %v236 = vunpack.c.l.b16 %v103
    %v237 = vunpack.c.h.b16 %v103
    %v238 = vunpack.c.l.b16 %v104
    %v239 = vunpack.c.h.b16 %v104
    %v240 = vunpack.c.l.b16 %v105
    %v241 = vunpack.c.h.b16 %v105
    %v242 = vunpack.c.l.b16 %v106
    %v243 = vunpack.c.h.b16 %v106
    %v244 = vunpack.c.l.b16 %v107
    %v245 = vunpack.c.h.b16 %v107
    %v246 = vpack.c.b16 %v232, %v230
    %v247 = vpack.c.b16 %v233, %v231
    %v248 = vpack.c.b16 %v236, %v234
    %v249 = vpack.c.b16 %v237, %v235
    %v250 = vpack.c.b16 %v240, %v238
    %v251 = vpack.c.b16 %v241, %v239
    %v252 = vpack.c.b16 %v244, %v242
    %v253 = vpack.c.b16 %v245, %v243
    %v263 = vsel %vm87, %v98, 0
    %v266 = vsel %vm87, %v99, 0
    %268 = vmatprep.subr.bf16.mxu0 %v247
    %269 = vmatpush1.bf16.msra.mxu0 %v246
    %270 = vmatprep.subr.bf16.mxu0 %v249
    %271 = vmatpush1.bf16.msra.mxu0 %v248
    %272 = vmatprep.subr.bf16.mxu0 %v251
    %273 = vmatpush1.bf16.msra.mxu0 %v250
    %274 = vmatprep.subr.bf16.mxu0 %v253
    %275 = vmatpush1.bf16.msra.mxu0 %v252
    %276 = vmatprep.subr.bf16.mxu0 0
    %277 = vmatpush1.bf16.msra.mxu0 0
    %278 = vmatprep.subr.bf16.mxu0 0
    %279 = vmatpush1.bf16.msra.mxu0 0
    %280 = vmatprep.subr.bf16.mxu0 0
    %281 = vmatpush1.bf16.msra.mxu0 0
    %282 = vmatprep.subr.bf16.mxu0 0
    %283 = vmatpush1.bf16.msra.mxu0 0
    %284 = vmatprep.subr.bf16.mxu0 0
    %285 = vmatpush1.bf16.msra.mxu0 0
    %286 = vmatprep.subr.bf16.mxu0 0
    %287 = vmatpush1.bf16.msra.mxu0 0
    %288 = vmatprep.subr.bf16.mxu0 0
    %289 = vmatpush1.bf16.msra.mxu0 0
    %290 = vmatprep.subr.bf16.mxu0 0
    %291 = vmatpush1.bf16.msra.mxu0 0
    %292 = vmatprep.subr.bf16.mxu0 0
    %293 = vmatpush1.bf16.msra.mxu0 0
    %294 = vmatprep.subr.bf16.mxu0 0
    %295 = vmatpush1.bf16.msra.mxu0 0
    %296 = vmatprep.subr.bf16.mxu0 0
    %297 = vmatpush1.bf16.msra.mxu0 0
    %298 = vmatprep.subr.bf16.mxu0 0
    %299 = vmatpush1.bf16.msra.mxu0 0
    %300 = vmatprep.mubr.bf16.mxu0 0
    %301 = vmatmul.mubr.bf16.gmra.mrb[0].mxu0 %v263
    %v302 = vpop.f32.mrb[0].mxu0
    %v303 = vadd.f32 %v204, %v302
    %v304 = vpop.f32.mrb[0].mxu0
    %v305 = vadd.f32 %v206, %v304
    %v306 = vpop.f32.mrb[0].mxu0
    %v307 = vadd.f32 %v208, %v306
    %v308 = vpop.f32.mrb[0].mxu0
    %v309 = vadd.f32 %v210, %v308
    %310 = vmatprep.mubr.bf16.mxu0 0
    %311 = vmatmul.mubr.bf16.gmra.mrb[0].mxu0 %v266
    %v312 = vpop.f32.mrb[0].mxu0
    %v313 = vadd.f32 %v214, %v312
    %v314 = vpop.f32.mrb[0].mxu0
    %v315 = vadd.f32 %v216, %v314
    %v316 = vpop.f32.mrb[0].mxu0
    %v317 = vadd.f32 %v218, %v316
    %v318 = vpop.f32.mrb[0].mxu0
    %v319 = vadd.f32 %v220, %v318
    %320 = vdwg.mxu0
    %v321 = vld [vmem:[#allocation2 + $0x2] sm:$0xff]
    %v322 = vld [vmem:[#allocation2 + $0xa] sm:$0xff]
    %v323 = vld [vmem:[%s95 + $0x2] sm:$0xff]
    %v324 = vld [vmem:[%s95 + $0xa] sm:$0xff]
    %v325 = vpack.c.bf16 %v322, %v321
    %v326 = vpack.c.bf16 %v324, %v323
    %s327 = scalar_lea.vmem [#allocation7], 128
    %v328 = vld [vmem:[%s327] sm:$0xff]
    %v329 = vld [vmem:[%s327 + $0x8] sm:$0xff]
    %v330 = vld [vmem:[%s327 + $0x10] sm:$0xff]
    %v331 = vld [vmem:[%s327 + $0x18] sm:$0xff]
    %v332 = vld [vmem:[%s327 + $0x20] sm:$0xff]
    %v333 = vld [vmem:[%s327 + $0x28] sm:$0xff]
    %v334 = vld [vmem:[%s327 + $0x30] sm:$0xff]
    %v335 = vld [vmem:[%s327 + $0x38] sm:$0xff]
    %v344 = vunpack.c.l.b16 %v328
    %v345 = vunpack.c.h.b16 %v328
    %v346 = vunpack.c.l.b16 %v329
    %v347 = vunpack.c.h.b16 %v329
    %v348 = vunpack.c.l.b16 %v330
    %v349 = vunpack.c.h.b16 %v330
    %v350 = vunpack.c.l.b16 %v331
    %v351 = vunpack.c.h.b16 %v331
    %v352 = vunpack.c.l.b16 %v332
    %v353 = vunpack.c.h.b16 %v332
    %v354 = vunpack.c.l.b16 %v333
    %v355 = vunpack.c.h.b16 %v333
    %v356 = vunpack.c.l.b16 %v334
    %v357 = vunpack.c.h.b16 %v334
    %v358 = vunpack.c.l.b16 %v335
    %v359 = vunpack.c.h.b16 %v335
    %v360 = vpack.c.b16 %v346, %v344
    %v361 = vpack.c.b16 %v347, %v345
    %v362 = vpack.c.b16 %v350, %v348
    %v363 = vpack.c.b16 %v351, %v349
    %v364 = vpack.c.b16 %v354, %v352
    %v365 = vpack.c.b16 %v355, %v353
    %v366 = vpack.c.b16 %v358, %v356
    %v367 = vpack.c.b16 %v359, %v357
    %v377 = vsel %vm87, %v325, 0
    %v380 = vsel %vm87, %v326, 0
    %382 = vmatprep.subr.bf16.mxu0 %v361
    %383 = vmatpush1.bf16.msra.mxu0 %v360
    %384 = vmatprep.subr.bf16.mxu0 %v363
    %385 = vmatpush1.bf16.msra.mxu0 %v362
    %386 = vmatprep.subr.bf16.mxu0 %v365
    %387 = vmatpush1.bf16.msra.mxu0 %v364
    %388 = vmatprep.subr.bf16.mxu0 %v367
    %389 = vmatpush1.bf16.msra.mxu0 %v366
    %390 = vmatprep.subr.bf16.mxu0 0
    %391 = vmatpush1.bf16.msra.mxu0 0
    %392 = vmatprep.subr.bf16.mxu0 0
    %393 = vmatpush1.bf16.msra.mxu0 0
    %394 = vmatprep.subr.bf16.mxu0 0
    %395 = vmatpush1.bf16.msra.mxu0 0
    %396 = vmatprep.subr.bf16.mxu0 0
    %397 = vmatpush1.bf16.msra.mxu0 0
    %398 = vmatprep.subr.bf16.mxu0 0
    %399 = vmatpush1.bf16.msra.mxu0 0
    %400 = vmatprep.subr.bf16.mxu0 0
    %401 = vmatpush1.bf16.msra.mxu0 0
    %402 = vmatprep.subr.bf16.mxu0 0
    %403 = vmatpush1.bf16.msra.mxu0 0
    %404 = vmatprep.subr.bf16.mxu0 0
    %405 = vmatpush1.bf16.msra.mxu0 0
    %406 = vmatprep.subr.bf16.mxu0 0
    %407 = vmatpush1.bf16.msra.mxu0 0
    %408 = vmatprep.subr.bf16.mxu0 0
    %409 = vmatpush1.bf16.msra.mxu0 0
    %410 = vmatprep.subr.bf16.mxu0 0
    %411 = vmatpush1.bf16.msra.mxu0 0
    %412 = vmatprep.subr.bf16.mxu0 0
    %413 = vmatpush1.bf16.msra.mxu0 0
    %414 = vmatprep.mubr.bf16.mxu0 0
    %415 = vmatmul.mubr.bf16.gmra.mrb[0].mxu0 %v377
    %v416 = vpop.f32.mrb[0].mxu0
    %v417 = vadd.f32 0.0, %v416
    %v418 = vpop.f32.mrb[0].mxu0
    %v419 = vadd.f32 0.0, %v418
    %v420 = vpop.f32.mrb[0].mxu0
    %v421 = vadd.f32 0.0, %v420
    %v422 = vpop.f32.mrb[0].mxu0
    %v423 = vadd.f32 0.0, %v422
    %424 = vmatprep.mubr.bf16.mxu0 0
    %425 = vmatmul.mubr.bf16.gmra.mrb[0].mxu0 %v380
    %v426 = vpop.f32.mrb[0].mxu0
    %v427 = vadd.f32 0.0, %v426
    %v428 = vpop.f32.mrb[0].mxu0
    %v429 = vadd.f32 0.0, %v428
    %v430 = vpop.f32.mrb[0].mxu0
    %v431 = vadd.f32 0.0, %v430
    %v432 = vpop.f32.mrb[0].mxu0
    %v433 = vadd.f32 0.0, %v432
    %434 = vdwg.mxu0
    %v435 = vadd.f32 %v303, %v417
    %v436 = vadd.f32 %v305, %v419
    %v437 = vadd.f32 %v307, %v421
    %v438 = vadd.f32 %v309, %v423
    %v439 = vadd.f32 %v313, %v427
    %v440 = vadd.f32 %v315, %v429
    %v441 = vadd.f32 %v317, %v431
    %v442 = vadd.f32 %v319, %v433
    %v444 = vlaneseq
    %v445 = vshrl.u32 %v444, 7
    %v446 = vsub.s32 0, %v445
    %v447 = vrot.slane %v92, %v446
    %v448 = vlaneseq
    %v449 = vshrl.u32 %v448, 7
    %v450 = vsub.s32 1, %v449
    %v451 = vrot.slane %v92, %v450
    %v454 = vadd.f32 %v435, %v447
    %v455 = vadd.f32 %v436, %v451
    %v456 = vadd.f32 %v437, %v447
    %v457 = vadd.f32 %v438, %v451
    %v458 = vadd.f32 %v439, %v447
    %v459 = vadd.f32 %v440, %v451
    %v460 = vadd.f32 %v441, %v447
    %v461 = vadd.f32 %v442, %v451
    %v462 = vmax.f32 %v454, 0.0
    %v463 = vmax.f32 %v455, 0.0
    %v464 = vmax.f32 %v456, 0.0
    %v465 = vmax.f32 %v457, 0.0
    %v466 = vmax.f32 %v458, 0.0
    %v467 = vmax.f32 %v459, 0.0
    %v468 = vmax.f32 %v460, 0.0
    %v469 = vmax.f32 %v461, 0.0
    %vm474 = vcmask 1040384
    %v475 = vrot.slane %v462, 7
    %v476 = vrot.slane %v463, 7
    %v477 = vrot.slane %v464, 7
    %v478 = vsel %vm474, %v475, %v477
    %v479 = vrot.slane %v465, 7
    %v480 = vsel %vm474, %v476, %v479
    %487 = vst [vmem:[#allocation3] sm:$0xfe] %v475
    %vm488 = vcmask 130049
    %489 = vst.msk [vmem:[#allocation3 + $0x8] sm:$0xfe] %vm488, %v476
    %490 = vst [vmem:[#allocation3 + $0x10] sm:$0xff] %v478
    %vm491 = vcmask 130048
    %492 = vst.msk [vmem:[#allocation3 + $0x18] sm:$0xff] %vm491, %v480
    %493 = vst [vmem:[#allocation3 + $0x20] sm:$0x1] %v477
    %vm494 = vcmask 122880
    %495 = vst.msk [vmem:[#allocation3 + $0x28] sm:$0x1] %vm494, %v479
    %v500 = vrot.slane %v466, 7
    %v501 = vrot.slane %v467, 7
    %v502 = vrot.slane %v468, 7
    %v503 = vsel %vm474, %v500, %v502
    %v504 = vrot.slane %v469, 7
    %v505 = vsel %vm474, %v501, %v504
    %s512 = scalar_lea.vmem [#allocation3], 48
    %513 = vst [vmem:[%s512] sm:$0xfe] %v500
    %514 = vst.msk [vmem:[%s512 + $0x8] sm:$0xfe] %vm488, %v501
    %515 = vst [vmem:[%s512 + $0x10] sm:$0xff] %v503
    %516 = vst.msk [vmem:[%s512 + $0x18] sm:$0xff] %vm491, %v505
    %517 = vst [vmem:[%s512 + $0x20] sm:$0x1] %v502
    %518 = vst.msk [vmem:[%s512 + $0x28] sm:$0x1] %vm494, %v504
    %v519 = vld [vmem:[%s4] sm:$0x1]
    %v520 = vld [vmem:[#allocation3] sm:$0xff]
    %v521 = vld [vmem:[#allocation3 + $0x8] sm:$0xff]
    %v522 = vld [vmem:[#allocation3 + $0x10] sm:$0xff]
    %v523 = vld [vmem:[#allocation3 + $0x18] sm:$0xff]
    %v524 = vld [vmem:[%s512] sm:$0xff]
    %v525 = vld [vmem:[%s512 + $0x8] sm:$0xff]
    %v526 = vld [vmem:[%s512 + $0x10] sm:$0xff]
    %v527 = vld [vmem:[%s512 + $0x18] sm:$0xff]
    %v528 = vpack.c.bf16 %v522, %v520
    %v529 = vpack.c.bf16 %v523, %v521
    %v530 = vpack.c.bf16 %v526, %v524
    %v531 = vpack.c.bf16 %v527, %v525
    %v532 = vld [vmem:[#allocation9] sm:$0xf]
    %v533 = vld [vmem:[#allocation9 + $0x4] sm:$0xf]
    %v534 = vld [vmem:[#allocation9 + $0x8] sm:$0xf]
    %v535 = vld [vmem:[#allocation9 + $0xc] sm:$0xf]
    %v536 = vld [vmem:[#allocation9 + $0x10] sm:$0xf]
    %v537 = vld [vmem:[#allocation9 + $0x14] sm:$0xf]
    %v538 = vld [vmem:[#allocation9 + $0x18] sm:$0xf]
    %v539 = vld [vmem:[#allocation9 + $0x1c] sm:$0xf]
    %v540 = vld [vmem:[#allocation9 + $0x20] sm:$0xf]
    %v541 = vld [vmem:[#allocation9 + $0x24] sm:$0xf]
    %v542 = vld [vmem:[#allocation9 + $0x28] sm:$0xf]
    %v543 = vld [vmem:[#allocation9 + $0x2c] sm:$0xf]
    %v544 = vld [vmem:[#allocation9 + $0x30] sm:$0xf]
    %v545 = vld [vmem:[#allocation9 + $0x34] sm:$0xf]
    %v546 = vld [vmem:[#allocation9 + $0x38] sm:$0xf]
    %v547 = vld [vmem:[#allocation9 + $0x3c] sm:$0xf]
    %v548 = vld [vmem:[#allocation9 + $0x40] sm:$0xf]
    %v549 = vld [vmem:[#allocation9 + $0x44] sm:$0xf]
    %v550 = vld [vmem:[#allocation3] sm:$0xfe]
    %v551 = vld [vmem:[#allocation3 + $0x8] sm:$0xfe]
    %v552 = vld [vmem:[#allocation3 + $0x20] sm:$0x1]
    %v553 = vld [vmem:[#allocation3 + $0x28] sm:$0x1]
    %v554 = vld [vmem:[%s512] sm:$0xfe]
    %v555 = vld [vmem:[%s512 + $0x8] sm:$0xfe]
    %v556 = vld [vmem:[%s512 + $0x20] sm:$0x1]
    %v557 = vld [vmem:[%s512 + $0x28] sm:$0x1]
    %vm564 = vcmask 1046528
    %v565 = vrot.slane %v550, 1
    %v566 = vrot.slane %v522, 1
    %v567 = vsel %vm564, %v565, %v566
    %v568 = vrot.slane %v551, 1
    %v569 = vrot.slane %v523, 1
    %v570 = vsel %vm564, %v568, %v569
    %v571 = vrot.slane %v552, 1
    %v572 = vsel %vm564, %v566, %v571
    %v573 = vrot.slane %v553, 1
    %v574 = vsel %vm564, %v569, %v573
    %v585 = vrot.slane %v554, 1
    %v586 = vrot.slane %v526, 1
    %v587 = vsel %vm564, %v585, %v586
    %v588 = vrot.slane %v555, 1
    %v589 = vrot.slane %v527, 1
    %v590 = vsel %vm564, %v588, %v589
    %v591 = vrot.slane %v556, 1
    %v592 = vsel %vm564, %v586, %v591
    %v593 = vrot.slane %v557, 1
    %v594 = vsel %vm564, %v589, %v593
    %v599 = vpack.c.bf16 %v572, %v567
    %v600 = vpack.c.bf16 %v574, %v570
    %v601 = vpack.c.bf16 %v592, %v587
    %v602 = vpack.c.bf16 %v594, %v590
    %s603 = scalar_lea.vmem [#allocation9], 72
    %v604 = vld [vmem:[%s603] sm:$0xf]
    %v605 = vld [vmem:[%s603 + $0x4] sm:$0xf]
    %v606 = vld [vmem:[%s603 + $0x8] sm:$0xf]
    %v607 = vld [vmem:[%s603 + $0xc] sm:$0xf]
    %v608 = vld [vmem:[%s603 + $0x10] sm:$0xf]
    %v609 = vld [vmem:[%s603 + $0x14] sm:$0xf]
    %v610 = vld [vmem:[%s603 + $0x18] sm:$0xf]
    %v611 = vld [vmem:[%s603 + $0x1c] sm:$0xf]
    %v612 = vld [vmem:[%s603 + $0x20] sm:$0xf]
    %v613 = vld [vmem:[%s603 + $0x24] sm:$0xf]
    %v614 = vld [vmem:[%s603 + $0x28] sm:$0xf]
    %v615 = vld [vmem:[%s603 + $0x2c] sm:$0xf]
    %v616 = vld [vmem:[%s603 + $0x30] sm:$0xf]
    %v617 = vld [vmem:[%s603 + $0x34] sm:$0xf]
    %v618 = vld [vmem:[%s603 + $0x38] sm:$0xf]
    %v619 = vld [vmem:[%s603 + $0x3c] sm:$0xf]
    %v620 = vld [vmem:[%s603 + $0x40] sm:$0xf]
    %v621 = vld [vmem:[%s603 + $0x44] sm:$0xf]
    %v640 = vunpack.c.l.b16 %v604
    %v641 = vunpack.c.l.b16 %v605
    %v642 = vunpack.c.l.b16 %v606
    %v643 = vunpack.c.l.b16 %v607
    %v644 = vunpack.c.l.b16 %v608
    %v645 = vunpack.c.l.b16 %v609
    %v646 = vunpack.c.l.b16 %v610
    %v647 = vunpack.c.l.b16 %v611
    %v648 = vunpack.c.l.b16 %v612
    %v649 = vunpack.c.l.b16 %v613
    %v650 = vunpack.c.l.b16 %v614
    %v651 = vunpack.c.l.b16 %v615
    %v652 = vunpack.c.l.b16 %v616
    %v653 = vunpack.c.l.b16 %v617
    %v654 = vunpack.c.l.b16 %v618
    %v655 = vunpack.c.l.b16 %v619
    %v656 = vunpack.c.l.b16 %v620
    %v657 = vunpack.c.l.b16 %v621
    %v658 = vpack.c.b16 %v641, %v640
    %v659 = vpack.c.b16 %v643, %v642
    %v660 = vpack.c.b16 %v645, %v644
    %v661 = vpack.c.b16 %v647, %v646
    %v662 = vpack.c.b16 %v649, %v648
    %v663 = vpack.c.b16 %v651, %v650
    %v664 = vpack.c.b16 %v653, %v652
    %v665 = vpack.c.b16 %v655, %v654
    %v666 = vpack.c.b16 %v657, %v656
    %v677 = vsel %vm491, %v600, 0
    %v680 = vsel %vm491, %v602, 0
    %682 = vmatprep.subr.bf16.mxu0 0
    %683 = vmatpush1.bf16.msra.mxu0 %v658
    %684 = vmatprep.subr.bf16.mxu0 0
    %685 = vmatpush1.bf16.msra.mxu0 %v659
    %686 = vmatprep.subr.bf16.mxu0 0
    %687 = vmatpush1.bf16.msra.mxu0 %v660
    %688 = vmatprep.subr.bf16.mxu0 0
    %689 = vmatpush1.bf16.msra.mxu0 %v661
    %690 = vmatprep.subr.bf16.mxu0 0
    %691 = vmatpush1.bf16.msra.mxu0 %v662
    %692 = vmatprep.subr.bf16.mxu0 0
    %693 = vmatpush1.bf16.msra.mxu0 %v663
    %694 = vmatprep.subr.bf16.mxu0 0
    %695 = vmatpush1.bf16.msra.mxu0 %v664
    %696 = vmatprep.subr.bf16.mxu0 0
    %697 = vmatpush1.bf16.msra.mxu0 %v665
    %698 = vmatprep.subr.bf16.mxu0 0
    %699 = vmatpush1.bf16.msra.mxu0 %v666
    %700 = vmatprep.subr.bf16.mxu0 0
    %701 = vmatpush1.bf16.msra.mxu0 0
    %702 = vmatprep.subr.bf16.mxu0 0
    %703 = vmatpush1.bf16.msra.mxu0 0
    %704 = vmatprep.subr.bf16.mxu0 0
    %705 = vmatpush1.bf16.msra.mxu0 0
    %706 = vmatprep.subr.bf16.mxu0 0
    %707 = vmatpush1.bf16.msra.mxu0 0
    %708 = vmatprep.subr.bf16.mxu0 0
    %709 = vmatpush1.bf16.msra.mxu0 0
    %710 = vmatprep.subr.bf16.mxu0 0
    %711 = vmatpush1.bf16.msra.mxu0 0
    %712 = vmatprep.subr.bf16.mxu0 0
    %713 = vmatpush1.bf16.msra.mxu0 0
    %714 = vmatprep.mubr.bf16.mxu0 %v677
    %715 = vmatmul.mubr.bf16.gmra.mrb[0].mxu0 %v599
    %v716 = vpop.f32.mrb[0].mxu0
    %v717 = vadd.f32 0.0, %v716
    %v718 = vpop.f32.mrb[0].mxu0
    %v719 = vpop.f32.mrb[0].mxu0
    %v720 = vadd.f32 0.0, %v719
    %v721 = vpop.f32.mrb[0].mxu0
    %722 = vmatprep.mubr.bf16.mxu0 %v680
    %723 = vmatmul.mubr.bf16.gmra.mrb[0].mxu0 %v601
    %v724 = vpop.f32.mrb[0].mxu0
    %v725 = vadd.f32 0.0, %v724
    %v726 = vpop.f32.mrb[0].mxu0
    %v727 = vpop.f32.mrb[0].mxu0
    %v728 = vadd.f32 0.0, %v727
    %v729 = vpop.f32.mrb[0].mxu0
    %730 = vdwg.mxu0
    %v749 = vunpack.c.l.b16 %v532
    %v750 = vunpack.c.l.b16 %v533
    %v751 = vunpack.c.l.b16 %v534
    %v752 = vunpack.c.l.b16 %v535
    %v753 = vunpack.c.l.b16 %v536
    %v754 = vunpack.c.l.b16 %v537
    %v755 = vunpack.c.l.b16 %v538
    %v756 = vunpack.c.l.b16 %v539
    %v757 = vunpack.c.l.b16 %v540
    %v758 = vunpack.c.l.b16 %v541
    %v759 = vunpack.c.l.b16 %v542
    %v760 = vunpack.c.l.b16 %v543
    %v761 = vunpack.c.l.b16 %v544
    %v762 = vunpack.c.l.b16 %v545
    %v763 = vunpack.c.l.b16 %v546
    %v764 = vunpack.c.l.b16 %v547
    %v765 = vunpack.c.l.b16 %v548
    %v766 = vunpack.c.l.b16 %v549
    %v767 = vpack.c.b16 %v750, %v749
    %v768 = vpack.c.b16 %v752, %v751
    %v769 = vpack.c.b16 %v754, %v753
    %v770 = vpack.c.b16 %v756, %v755
    %v771 = vpack.c.b16 %v758, %v757
    %v772 = vpack.c.b16 %v760, %v759
    %v773 = vpack.c.b16 %v762, %v761
    %v774 = vpack.c.b16 %v764, %v763
    %v775 = vpack.c.b16 %v766, %v765
    %v786 = vsel %vm491, %v529, 0
    %v789 = vsel %vm491, %v531, 0
    %791 = vmatprep.subr.bf16.mxu0 0
    %792 = vmatpush1.bf16.msra.mxu0 %v767
    %793 = vmatprep.subr.bf16.mxu0 0
    %794 = vmatpush1.bf16.msra.mxu0 %v768
    %795 = vmatprep.subr.bf16.mxu0 0
    %796 = vmatpush1.bf16.msra.mxu0 %v769
    %797 = vmatprep.subr.bf16.mxu0 0
    %798 = vmatpush1.bf16.msra.mxu0 %v770
    %799 = vmatprep.subr.bf16.mxu0 0
    %800 = vmatpush1.bf16.msra.mxu0 %v771
    %801 = vmatprep.subr.bf16.mxu0 0
    %802 = vmatpush1.bf16.msra.mxu0 %v772
    %803 = vmatprep.subr.bf16.mxu0 0
    %804 = vmatpush1.bf16.msra.mxu0 %v773
    %805 = vmatprep.subr.bf16.mxu0 0
    %806 = vmatpush1.bf16.msra.mxu0 %v774
    %807 = vmatprep.subr.bf16.mxu0 0
    %808 = vmatpush1.bf16.msra.mxu0 %v775
    %809 = vmatprep.subr.bf16.mxu0 0
    %810 = vmatpush1.bf16.msra.mxu0 0
    %811 = vmatprep.subr.bf16.mxu0 0
    %812 = vmatpush1.bf16.msra.mxu0 0
    %813 = vmatprep.subr.bf16.mxu0 0
    %814 = vmatpush1.bf16.msra.mxu0 0
    %815 = vmatprep.subr.bf16.mxu0 0
    %816 = vmatpush1.bf16.msra.mxu0 0
    %817 = vmatprep.subr.bf16.mxu0 0
    %818 = vmatpush1.bf16.msra.mxu0 0
    %819 = vmatprep.subr.bf16.mxu0 0
    %820 = vmatpush1.bf16.msra.mxu0 0
    %821 = vmatprep.subr.bf16.mxu0 0
    %822 = vmatpush1.bf16.msra.mxu0 0
    %823 = vmatprep.mubr.bf16.mxu0 %v786
    %824 = vmatmul.mubr.bf16.gmra.mrb[0].mxu0 %v528
    %v825 = vpop.f32.mrb[0].mxu0
    %v826 = vadd.f32 %v717, %v825
    %v827 = vpop.f32.mrb[0].mxu0
    %v828 = vpop.f32.mrb[0].mxu0
    %v829 = vadd.f32 %v720, %v828
    %v830 = vpop.f32.mrb[0].mxu0
    %831 = vmatprep.mubr.bf16.mxu0 %v789
    %832 = vmatmul.mubr.bf16.gmra.mrb[0].mxu0 %v530
    %v833 = vpop.f32.mrb[0].mxu0
    %v834 = vadd.f32 %v725, %v833
    %v835 = vpop.f32.mrb[0].mxu0
    %v836 = vpop.f32.mrb[0].mxu0
    %v837 = vadd.f32 %v728, %v836
    %v838 = vpop.f32.mrb[0].mxu0
    %839 = vdwg.mxu0
    %v840 = vld [vmem:[#allocation3] sm:$0xfc]
    %v841 = vld [vmem:[#allocation3 + $0x8] sm:$0xfc]
    %v842 = vld [vmem:[#allocation3 + $0x20] sm:$0x3]
    %v843 = vld [vmem:[#allocation3 + $0x28] sm:$0x3]
    %v844 = vld [vmem:[%s512] sm:$0xfc]
    %v845 = vld [vmem:[%s512 + $0x8] sm:$0xfc]
    %v846 = vld [vmem:[%s512 + $0x20] sm:$0x3]
    %v847 = vld [vmem:[%s512 + $0x28] sm:$0x3]
    %vm852 = vcmask 1045504
    %v853 = vrot.slane %v840, 2
    %v854 = vrot.slane %v522, 2
    %v855 = vsel %vm852, %v853, %v854
    %v856 = vrot.slane %v841, 2
    %v857 = vrot.slane %v523, 2
    %v858 = vsel %vm852, %v856, %v857
    %v859 = vrot.slane %v842, 2
    %v860 = vsel %vm852, %v854, %v859
    %v861 = vrot.slane %v843, 2
    %v862 = vsel %vm852, %v857, %v861
    %v871 = vrot.slane %v844, 2
    %v872 = vrot.slane %v526, 2
    %v873 = vsel %vm852, %v871, %v872
    %v874 = vrot.slane %v845, 2
    %v875 = vrot.slane %v527, 2
    %v876 = vsel %vm852, %v874, %v875
    %v877 = vrot.slane %v846, 2
    %v878 = vsel %vm852, %v872, %v877
    %v879 = vrot.slane %v847, 2
    %v880 = vsel %vm852, %v875, %v879
    %v885 = vpack.c.bf16 %v860, %v855
    %v886 = vpack.c.bf16 %v862, %v858
    %v887 = vpack.c.bf16 %v878, %v873
    %v888 = vpack.c.bf16 %v880, %v876
    %s889 = scalar_lea.vmem [#allocation9], 144
    %v890 = vld [vmem:[%s889] sm:$0xf]
    %v891 = vld [vmem:[%s889 + $0x4] sm:$0xf]
    %v892 = vld [vmem:[%s889 + $0x8] sm:$0xf]
    %v893 = vld [vmem:[%s889 + $0xc] sm:$0xf]
    %v894 = vld [vmem:[%s889 + $0x10] sm:$0xf]
    %v895 = vld [vmem:[%s889 + $0x14] sm:$0xf]
    %v896 = vld [vmem:[%s889 + $0x18] sm:$0xf]
    %v897 = vld [vmem:[%s889 + $0x1c] sm:$0xf]
    %v898 = vld [vmem:[%s889 + $0x20] sm:$0xf]
    %v899 = vld [vmem:[%s889 + $0x24] sm:$0xf]
    %v900 = vld [vmem:[%s889 + $0x28] sm:$0xf]
    %v901 = vld [vmem:[%s889 + $0x2c] sm:$0xf]
    %v902 = vld [vmem:[%s889 + $0x30] sm:$0xf]
    %v903 = vld [vmem:[%s889 + $0x34] sm:$0xf]
    %v904 = vld [vmem:[%s889 + $0x38] sm:$0xf]
    %v905 = vld [vmem:[%s889 + $0x3c] sm:$0xf]
    %v906 = vld [vmem:[%s889 + $0x40] sm:$0xf]
    %v907 = vld [vmem:[%s889 + $0x44] sm:$0xf]
    %v926 = vunpack.c.l.b16 %v890
    %v927 = vunpack.c.l.b16 %v891
    %v928 = vunpack.c.l.b16 %v892
    %v929 = vunpack.c.l.b16 %v893
    %v930 = vunpack.c.l.b16 %v894
    %v931 = vunpack.c.l.b16 %v895
    %v932 = vunpack.c.l.b16 %v896
    %v933 = vunpack.c.l.b16 %v897
    %v934 = vunpack.c.l.b16 %v898
    %v935 = vunpack.c.l.b16 %v899
    %v936 = vunpack.c.l.b16 %v900
    %v937 = vunpack.c.l.b16 %v901
    %v938 = vunpack.c.l.b16 %v902
    %v939 = vunpack.c.l.b16 %v903
    %v940 = vunpack.c.l.b16 %v904
    %v941 = vunpack.c.l.b16 %v905
    %v942 = vunpack.c.l.b16 %v906
    %v943 = vunpack.c.l.b16 %v907
    %v944 = vpack.c.b16 %v927, %v926
    %v945 = vpack.c.b16 %v929, %v928
    %v946 = vpack.c.b16 %v931, %v930
    %v947 = vpack.c.b16 %v933, %v932
    %v948 = vpack.c.b16 %v935, %v934
    %v949 = vpack.c.b16 %v937, %v936
    %v950 = vpack.c.b16 %v939, %v938
    %v951 = vpack.c.b16 %v941, %v940
    %v952 = vpack.c.b16 %v943, %v942
    %v963 = vsel %vm491, %v886, 0
    %v966 = vsel %vm491, %v888, 0
    %968 = vmatprep.subr.bf16.mxu0 0
    %969 = vmatpush1.bf16.msra.mxu0 %v944
    %970 = vmatprep.subr.bf16.mxu0 0
    %971 = vmatpush1.bf16.msra.mxu0 %v945
    %972 = vmatprep.subr.bf16.mxu0 0
    %973 = vmatpush1.bf16.msra.mxu0 %v946
    %974 = vmatprep.subr.bf16.mxu0 0
    %975 = vmatpush1.bf16.msra.mxu0 %v947
    %976 = vmatprep.subr.bf16.mxu0 0
    %977 = vmatpush1.bf16.msra.mxu0 %v948
    %978 = vmatprep.subr.bf16.mxu0 0
    %979 = vmatpush1.bf16.msra.mxu0 %v949
    %980 = vmatprep.subr.bf16.mxu0 0
    %981 = vmatpush1.bf16.msra.mxu0 %v950
    %982 = vmatprep.subr.bf16.mxu0 0
    %983 = vmatpush1.bf16.msra.mxu0 %v951
    %984 = vmatprep.subr.bf16.mxu0 0
    %985 = vmatpush1.bf16.msra.mxu0 %v952
    %986 = vmatprep.subr.bf16.mxu0 0
    %987 = vmatpush1.bf16.msra.mxu0 0
    %988 = vmatprep.subr.bf16.mxu0 0
    %989 = vmatpush1.bf16.msra.mxu0 0
    %990 = vmatprep.subr.bf16.mxu0 0
    %991 = vmatpush1.bf16.msra.mxu0 0
    %992 = vmatprep.subr.bf16.mxu0 0
    %993 = vmatpush1.bf16.msra.mxu0 0
    %994 = vmatprep.subr.bf16.mxu0 0
    %995 = vmatpush1.bf16.msra.mxu0 0
    %996 = vmatprep.subr.bf16.mxu0 0
    %997 = vmatpush1.bf16.msra.mxu0 0
    %998 = vmatprep.subr.bf16.mxu0 0
    %999 = vmatpush1.bf16.msra.mxu0 0
    %1000 = vmatprep.mubr.bf16.mxu0 %v963
    %1001 = vmatmul.mubr.bf16.gmra.mrb[0].mxu0 %v885
    %v1002 = vpop.f32.mrb[0].mxu0
    %v1003 = vadd.f32 0.0, %v1002
    %v1004 = vpop.f32.mrb[0].mxu0
    %v1005 = vpop.f32.mrb[0].mxu0
    %v1006 = vadd.f32 0.0, %v1005
    %v1007 = vpop.f32.mrb[0].mxu0
    %1008 = vmatprep.mubr.bf16.mxu0 %v966
    %1009 = vmatmul.mubr.bf16.gmra.mrb[0].mxu0 %v887
    %v1010 = vpop.f32.mrb[0].mxu0
    %v1011 = vadd.f32 0.0, %v1010
    %v1012 = vpop.f32.mrb[0].mxu0
    %v1013 = vpop.f32.mrb[0].mxu0
    %v1014 = vadd.f32 0.0, %v1013
    %v1015 = vpop.f32.mrb[0].mxu0
    %1016 = vdwg.mxu0
    %v1017 = vadd.f32 %v826, %v1003
    %v1018 = vadd.f32 %v829, %v1006
    %v1019 = vadd.f32 %v834, %v1011
    %v1020 = vadd.f32 %v837, %v1014
    %v1022 = vlaneseq
    %v1023 = vshrl.u32 %v1022, 7
    %v1024 = vsub.s32 0, %v1023
    %v1025 = vrot.slane %v519, %v1024
    %v1027 = vadd.f32 %v1017, %v1025
    %v1028 = vadd.f32 %v1018, %v1025
    %v1029 = vadd.f32 %v1019, %v1025
    %v1030 = vadd.f32 %v1020, %v1025
    %v1031 = vmax.f32 %v1027, 0.0
    %v1032 = vmax.f32 %v1028, 0.0
    %v1033 = vmax.f32 %v1029, 0.0
    %v1034 = vmax.f32 %v1030, 0.0
    %1035 = vst [vmem:[#allocation10] sm:$0xff] %v1031
    %1036 = vst [vmem:[#allocation10 + $0x8] sm:$0xff] %v1032
    %s1037 = scalar_lea.vmem [#allocation10], 16
    %1038 = vst [vmem:[%s1037] sm:$0xff] %v1033
    %1039 = vst [vmem:[%s1037 + $0x8] sm:$0xff] %v1034
    // Predicated region
    $region34: #{tpu_custom_call.1} parent=1 // pred_check
      _
    $region35: #{tpu_custom_call.1} parent=1 // pred_check_branch
      %1041 = sbr.rel (0) target = $region37
    $region36: #{tpu_custom_call.1} parent=1 // pred_region
      %s1043 = ssub.s32 512, 512
      %1044 = vsyncadd [#allocation6], %s1043
      %s1045 = sshll.u32 [#allocation10], 4
      %s1046 = int_to_ptr.vmem [resolvable:$true] %s1045
      %1051 = dma.vmem_to_hbm [thread:$0]  %s1046, 512, %s5, [#allocation6], 128, 128, 8
    $region37: #{tpu_custom_call.1} parent=1 // pred_fallthru
      _
    // Predicated region
    $region38: #{tpu_custom_call.1} parent=1 // pred_check
      _
    $region39: #{tpu_custom_call.1} parent=1 // pred_check_branch
      %1053 = sbr.rel (0) target = $region41
    $region40: #{tpu_custom_call.1} parent=1 // pred_region
      %1054 = dma.done [#allocation6], 512
    $region41: #{tpu_custom_call.1} parent=1 // pred_fallthru
      _
    %1055 = vsyncpa [#allocation5], 1
    %1056 = vsyncpa [#allocation8], 1
    %1057 = vsyncpa [#allocation6], 1

</llo_original>
